<compile_context>
chip_gen: v7x
topology: tpu7x:2x2x1
jax: 0.10.0
libtpu: 0.0.40
codegen_flags: <defaults>
</compile_context>

<pallas_src>
import functools

import jax
import jax.numpy as jnp
from jax import lax
from jax.experimental import pallas as pl
from jax.experimental.pallas import tpu as pltpu


def _round_up(x: int, m: int) -> int:
    return ((x + m - 1) // m) * m


def _make_kernel(temperature: float, eps_total: float, feat_dtype):
    inv_t = 1.0 / float(temperature)
    # Scale the (small) row operand when it is f32 (exact and cheaper than B*B);
    # for lower-precision features keep operands untouched and scale the f32 logits.
    scale_operand = jnp.dtype(feat_dtype) == jnp.dtype(jnp.float32)

    def kernel(frow_ref, fcol_ref, lrow_ref, lcol_ref, cval_ref, rval_ref,
               out_ref, m_ref, l_ref, t_ref, p_ref):
        i = pl.program_id(0)          # row (anchor) tile
        j = pl.program_id(1)          # col (contrast) tile -- reduction axis
        nj = pl.num_programs(1)

        @pl.when(j == 0)
        def _init():
            m_ref[...] = jnp.full_like(m_ref, -jnp.inf)
            l_ref[...] = jnp.zeros_like(l_ref)
            t_ref[...] = jnp.zeros_like(t_ref)
            p_ref[...] = jnp.zeros_like(p_ref)

        fr = frow_ref[...]            # (TR, D) native dtype
        fc = fcol_ref[...]            # (TC, D) native dtype
        if scale_operand:
            fr = fr * inv_t
        # Contract the feature axis of both operands directly at the MXU feed
        # (no explicit (B,D)->(D,B) transpose), accumulate in f32.
        s = lax.dot_general(fr, fc, (((1,), (1,)), ((), ())),
                            preferred_element_type=jnp.float32)   # (TR, TC)
        if not scale_operand:
            s = s * inv_t

        tr, tc = s.shape
        # Self-contrast (diagonal) exclusion, in global coordinates for this tile.
        r_id = i * tr + lax.broadcasted_iota(jnp.int32, (tr, tc), 0)
        c_id = j * tc + lax.broadcasted_iota(jnp.int32, (tr, tc), 1)
        ndiag_f = (r_id != c_id).astype(jnp.float32)

        cval = cval_ref[...]          # (1, TC) 1.0 for real columns, 0.0 for padding
        # Push padded columns far negative: they never win the row max and exp -> 0.
        s_for_max = s + (cval - 1.0) * 1e30

        # Online softmax statistics (row max + rescaled exp-sum over non-diag cols).
        m_prev = m_ref[...]
        m_new = jnp.maximum(m_prev, jnp.max(s_for_max, axis=1, keepdims=True))
        alpha = jnp.exp(m_prev - m_new)
        e = jnp.exp(s_for_max - m_new) * ndiag_f
        l_ref[...] = alpha * l_ref[...] + jnp.sum(e, axis=1, keepdims=True)

        # Positive-pair mask: same label, real column, not self. Pure VPU compares.
        same = (lrow_ref[...] == lcol_ref[...]) & (cval > 0.5)
        pos = jnp.where(same, ndiag_f, 0.0)
        # Max-independent accumulators (no rescaling needed): sum(pos*s) and sum(pos).
        t_ref[...] = t_ref[...] + jnp.sum(pos * s, axis=1, keepdims=True)
        p_ref[...] = p_ref[...] + jnp.sum(pos, axis=1, keepdims=True)
        m_ref[...] = m_new

        @pl.when(j == nj - 1)
        def _finalize():
            # log Z_i = log( sum_{j!=i, valid} exp(s_ij - M_i) + B*1e-20 )
            log_z = jnp.log(l_ref[...] + eps_total)
            # sum_j pos_ij * ((s_ij - M_i) - log Z_i) = t - P*(M + logZ)
            num = t_ref[...] - p_ref[...] * (m_ref[...] + log_z)
            mean_log_prob_pos = num / (1.0 + p_ref[...])
            # per-row loss, zeroed for padded rows (rval == 0)
            out_ref[...] = -mean_log_prob_pos * rval_ref[...]

    return kernel


@functools.partial(jax.jit, static_argnames=("temperature", "base_temperature"))
def contrastive_loss(features, labels, *, temperature=0.07, base_temperature=0.07):
    """features: (B, D) float; labels: (B,) int. Returns scalar f32 loss."""
    # base_temperature is unused by the reference forward (loss = -mean_log_prob_pos).
    del base_temperature
    B, D = features.shape
    feat_dtype = features.dtype

    # Lane-dense padding: D -> multiple of 128, B -> multiple of 8 (or of the tiles).
    D_pad = max(_round_up(D, 128), 128)
    if B <= 256:
        B_pad = _round_up(B, 8)
        TR = TC = B_pad                       # single tile per axis
    else:
        B_pad = _round_up(B, 512)
        TR, TC = 256, 512                     # fits well under 64 MiB VMEM (v7x)

    feats = jnp.zeros((B_pad, D_pad), feat_dtype).at[:B, :D].set(features)
    lab = labels.reshape(-1).astype(jnp.int32)
    lab_rows = jnp.full((B_pad, 1), -1, jnp.int32).at[:B, 0].set(lab)
    lab_cols = jnp.full((1, B_pad), -1, jnp.int32).at[0, :B].set(lab)  # lane-dense copy
    row_valid = jnp.zeros((B_pad, 1), jnp.float32).at[:B, 0].set(1.0)
    col_valid = jnp.zeros((1, B_pad), jnp.float32).at[0, :B].set(1.0)

    kernel = _make_kernel(float(temperature), float(B) * 1e-20, feat_dtype)
    grid = (B_pad // TR, B_pad // TC)

    per_row = pl.pallas_call(
        kernel,
        out_shape=jax.ShapeDtypeStruct((B_pad, 1), jnp.float32),
        grid_spec=pltpu.PrefetchScalarGridSpec(
            num_scalar_prefetch=0,
            grid=grid,
            in_specs=[
                pl.BlockSpec((TR, D_pad), lambda i, j: (i, 0)),   # anchor rows
                pl.BlockSpec((TC, D_pad), lambda i, j: (j, 0)),   # contrast cols
                pl.BlockSpec((TR, 1), lambda i, j: (i, 0)),       # row labels
                pl.BlockSpec((1, TC), lambda i, j: (0, j)),       # col labels (lane-dense)
                pl.BlockSpec((1, TC), lambda i, j: (0, j)),       # col valid
                pl.BlockSpec((TR, 1), lambda i, j: (i, 0)),       # row valid
            ],
            out_specs=pl.BlockSpec((TR, 1), lambda i, j: (i, 0)),
            scratch_shapes=[pltpu.VMEM((TR, 1), jnp.float32)] * 4,  # m, l, t, p
        ),
        compiler_params=pltpu.CompilerParams(
            dimension_semantics=("parallel", "arbitrary"),
            vmem_limit_bytes=48 * 1024 * 1024,
        ),
    )(feats, feats, lab_rows, lab_cols, col_valid, row_valid)

    # Tiny final reduction over the per-row losses (padded rows contribute 0).
    return jnp.sum(per_row[:, 0]) / B


def _reference(features, labels, temperature=0.07):
    # Pure-JAX replica of the PyTorch forward, for sanity checking.
    B = features.shape[0]
    lab = labels.reshape(B, 1)
    mask = (lab == lab.T).astype(jnp.float32)
    logits = (features @ features.T) / temperature
    logits = logits - jnp.max(logits, axis=1, keepdims=True)
    logits_mask = 1.0 - jnp.eye(B, dtype=jnp.float32)
    mask = mask * logits_mask
    exp_logits = jnp.exp(logits) * logits_mask + 1e-20
    log_prob = logits - jnp.log(exp_logits.sum(1, keepdims=True))
    mean_log_prob_pos = (mask * log_prob).sum(1) / (1.0 + mask.sum(1))
    return jnp.mean(-mean_log_prob_pos)


if __name__ == "__main__":
    key = jax.random.PRNGKey(0)
    kf, kl, kf2, kl2 = jax.random.split(key, 4)

    # Small case (toy shapes implied by the module's forward).
    B, D = 8, 32
    features = jax.random.normal(kf, (B, D), dtype=jnp.float32)
    labels = jax.random.randint(kl, (B,), 0, 3, dtype=jnp.int32)
    loss = jax.block_until_ready(contrastive_loss(features, labels))
    ref = _reference(features, labels)
    assert jnp.allclose(loss, ref, rtol=1e-5, atol=1e-5), (loss, ref)

    # Larger case exercising the tiled (row, col) grid and batch/hidden padding.
    B2, D2 = 300, 72
    f2 = jax.random.normal(kf2, (B2, D2), dtype=jnp.float32)
    f2 = f2 / jnp.linalg.norm(f2, axis=1, keepdims=True)   # SupCon-style normalized feats
    l2 = jax.random.randint(kl2, (B2,), 0, 5, dtype=jnp.int32)
    loss2 = jax.block_until_ready(contrastive_loss(f2, l2))
    ref2 = _reference(f2, l2)
    assert jnp.allclose(loss2, ref2, rtol=1e-4, atol=1e-4), (loss2, ref2)

    print("KERNEL_OK")
</pallas_src>

<mosaic_0001>
module attributes {stable_mosaic.version = 11 : i64} {
  func.func @kernel(%arg0: i32, %arg1: i32, %arg2: memref<8x128xf32, #tpu.memory_space<vmem>>, %arg3: memref<8x128xf32, #tpu.memory_space<vmem>>, %arg4: memref<8x1xi32, #tpu.memory_space<vmem>>, %arg5: memref<1x8xi32, #tpu.memory_space<vmem>>, %arg6: memref<1x8xf32, #tpu.memory_space<vmem>>, %arg7: memref<8x1xf32, #tpu.memory_space<vmem>>, %arg8: memref<8x1xf32, #tpu.memory_space<vmem>>, %arg9: memref<8x1xf32, #tpu.memory_space<vmem>>, %arg10: memref<8x1xf32, #tpu.memory_space<vmem>>, %arg11: memref<8x1xf32, #tpu.memory_space<vmem>>, %arg12: memref<8x1xf32, #tpu.memory_space<vmem>>) attributes {dimension_semantics = [#tpu.dimension_semantics<parallel>, #tpu.dimension_semantics<arbitrary>], iteration_bounds = array<i64: 1, 1>, scalar_prefetch = 0 : i64, scratch_operands = 4 : i64, tpu.core_type = #tpu.core_type<tc>, window_params = [{transform_indices = @transform_0, window_bounds = array<i64: 8, 128>}, {transform_indices = @transform_1, window_bounds = array<i64: 8, 128>}, {transform_indices = @transform_2, window_bounds = array<i64: 8, 1>}, {transform_indices = @transform_3, window_bounds = array<i64: 1, 8>}, {transform_indices = @transform_4, window_bounds = array<i64: 1, 8>}, {transform_indices = @transform_5, window_bounds = array<i64: 8, 1>}, {transform_indices = @transform_6, window_bounds = array<i64: 8, 1>}]} {
    %c0_i32 = arith.constant 0 : i32
    %0 = arith.cmpi eq, %arg1, %c0_i32 : i32
    %1 = arith.extui %0 : i1 to i32
    %c0_i32_0 = arith.constant 0 : i32
    %2 = arith.cmpi ne, %1, %c0_i32_0 : i32
    scf.if %2 {
      %cst_38 = arith.constant 0xFF800000 : f32
      %68 = vector.broadcast %cst_38 : f32 to vector<8x1xf32>
      %c0_39 = arith.constant 0 : index
      %c0_40 = arith.constant 0 : index
      %69 = vector.load %arg9[%c0_39, %c0_40] : memref<8x1xf32, #tpu.memory_space<vmem>>, vector<8x1xf32>
      tpu.vector_store %arg9[%c0_39, %c0_40], %68 {strides = array<i32>} : memref<8x1xf32, #tpu.memory_space<vmem>>, vector<8x1xf32>,
      %cst_41 = arith.constant 0.000000e+00 : f32
      %70 = vector.broadcast %cst_41 : f32 to vector<8x1xf32>
      %c0_42 = arith.constant 0 : index
      %c0_43 = arith.constant 0 : index
      %71 = vector.load %arg10[%c0_42, %c0_43] : memref<8x1xf32, #tpu.memory_space<vmem>>, vector<8x1xf32>
      tpu.vector_store %arg10[%c0_42, %c0_43], %70 {strides = array<i32>} : memref<8x1xf32, #tpu.memory_space<vmem>>, vector<8x1xf32>,
      %cst_44 = arith.constant 0.000000e+00 : f32
      %72 = vector.broadcast %cst_44 : f32 to vector<8x1xf32>
      %c0_45 = arith.constant 0 : index
      %c0_46 = arith.constant 0 : index
      %73 = vector.load %arg11[%c0_45, %c0_46] : memref<8x1xf32, #tpu.memory_space<vmem>>, vector<8x1xf32>
      tpu.vector_store %arg11[%c0_45, %c0_46], %72 {strides = array<i32>} : memref<8x1xf32, #tpu.memory_space<vmem>>, vector<8x1xf32>,
      %cst_47 = arith.constant 0.000000e+00 : f32
      %74 = vector.broadcast %cst_47 : f32 to vector<8x1xf32>
      %c0_48 = arith.constant 0 : index
      %c0_49 = arith.constant 0 : index
      %75 = vector.load %arg12[%c0_48, %c0_49] : memref<8x1xf32, #tpu.memory_space<vmem>>, vector<8x1xf32>
      tpu.vector_store %arg12[%c0_48, %c0_49], %74 {strides = array<i32>} : memref<8x1xf32, #tpu.memory_space<vmem>>, vector<8x1xf32>,
    } else {
    }
    %c0 = arith.constant 0 : index
    %c0_1 = arith.constant 0 : index
    %3 = vector.load %arg2[%c0, %c0_1] : memref<8x128xf32, #tpu.memory_space<vmem>>, vector<8x128xf32>
    %c0_2 = arith.constant 0 : index
    %c0_3 = arith.constant 0 : index
    %4 = vector.load %arg3[%c0_2, %c0_3] : memref<8x128xf32, #tpu.memory_space<vmem>>, vector<8x128xf32>
    %cst = arith.constant 14.2857141 : f32
    %5 = vector.broadcast %cst : f32 to vector<8x128xf32>
    %6 = arith.mulf %3, %5 : vector<8x128xf32>
    %cst_4 = arith.constant dense<0.000000e+00> : vector<8x8xf32>
    %7 = tpu.matmul %6, %4, %cst_4 {dimension_numbers = #tpu.dot_dimension_numbers<[1], [1], [0], [0], [0, 0, 1, 0], [], []>} : vector<8x128xf32>, vector<8x128xf32>, vector<8x8xf32> -> vector<8x8xf32>
    %c8_i32 = arith.constant 8 : i32
    %8 = arith.muli %arg0, %c8_i32 : i32
    %9 = tpu.iota {dimensions = array<i32: 0>} : vector<8x8xi32>
    %10 = vector.broadcast %8 : i32 to vector<8x8xi32>
    %11 = arith.addi %10, %9 : vector<8x8xi32>
    %c8_i32_5 = arith.constant 8 : i32
    %12 = arith.muli %arg1, %c8_i32_5 : i32
    %13 = tpu.iota {dimensions = array<i32: 1>} : vector<8x8xi32>
    %14 = vector.broadcast %12 : i32 to vector<8x8xi32>
    %15 = arith.addi %14, %13 : vector<8x8xi32>
    %16 = arith.cmpi ne, %11, %15 : vector<8x8xi32>
    %17 = arith.extui %16 : vector<8x8xi1> to vector<8x8xi32>
    %18 = arith.sitofp %17 : vector<8x8xi32> to vector<8x8xf32>
    %c0_6 = arith.constant 0 : index
    %c0_7 = arith.constant 0 : index
    %19 = vector.load %arg6[%c0_6, %c0_7] : memref<1x8xf32, #tpu.memory_space<vmem>>, vector<1x8xf32>
    %cst_8 = arith.constant 1.000000e+00 : f32
    %20 = vector.broadcast %cst_8 : f32 to vector<1x8xf32>
    %21 = arith.subf %19, %20 : vector<1x8xf32>
    %cst_9 = arith.constant 1.000000e+30 : f32
    %22 = vector.broadcast %cst_9 : f32 to vector<1x8xf32>
    %23 = arith.mulf %21, %22 : vector<1x8xf32>
    %24 = vector.broadcast %23 : vector<1x8xf32> to vector<8x8xf32>
    %25 = arith.addf %7, %24 : vector<8x8xf32>
    %c0_10 = arith.constant 0 : index
    %c0_11 = arith.constant 0 : index
    %26 = vector.load %arg9[%c0_10, %c0_11] : memref<8x1xf32, #tpu.memory_space<vmem>>, vector<8x1xf32>
    %cst_12 = arith.constant dense<0xFF800000> : vector<8xf32>
    %27 = vector.multi_reduction <maximumf>, %25, %cst_12 [1] : vector<8x8xf32> to vector<8xf32>
    %28 = vector.shape_cast %27 : vector<8xf32> to vector<8x1xf32>
    %29 = arith.maximumf %26, %28 : vector<8x1xf32>
    %30 = arith.subf %26, %29 : vector<8x1xf32>
    %31 = math.exp %30 : vector<8x1xf32>
    %32 = vector.broadcast %29 : vector<8x1xf32> to vector<8x8xf32>
    %33 = arith.subf %25, %32 : vector<8x8xf32>
    %34 = math.exp %33 : vector<8x8xf32>
    %35 = arith.mulf %34, %18 : vector<8x8xf32>
    %c0_13 = arith.constant 0 : index
    %c0_14 = arith.constant 0 : index
    %36 = vector.load %arg10[%c0_13, %c0_14] : memref<8x1xf32, #tpu.memory_space<vmem>>, vector<8x1xf32>
    %37 = arith.mulf %31, %36 : vector<8x1xf32>
    %cst_15 = arith.constant dense<0.000000e+00> : vector<8xf32>
    %38 = vector.multi_reduction <add>, %35, %cst_15 [1] : vector<8x8xf32> to vector<8xf32>
    %39 = vector.shape_cast %38 : vector<8xf32> to vector<8x1xf32>
    %40 = arith.addf %37, %39 : vector<8x1xf32>
    %c0_16 = arith.constant 0 : index
    %c0_17 = arith.constant 0 : index
    %41 = vector.load %arg10[%c0_16, %c0_17] : memref<8x1xf32, #tpu.memory_space<vmem>>, vector<8x1xf32>
    tpu.vector_store %arg10[%c0_16, %c0_17], %40 {strides = array<i32>} : memref<8x1xf32, #tpu.memory_space<vmem>>, vector<8x1xf32>,
    %c0_18 = arith.constant 0 : index
    %c0_19 = arith.constant 0 : index
    %42 = vector.load %arg4[%c0_18, %c0_19] : memref<8x1xi32, #tpu.memory_space<vmem>>, vector<8x1xi32>
    %c0_20 = arith.constant 0 : index
    %c0_21 = arith.constant 0 : index
    %43 = vector.load %arg5[%c0_20, %c0_21] : memref<1x8xi32, #tpu.memory_space<vmem>>, vector<1x8xi32>
    %44 = vector.broadcast %42 : vector<8x1xi32> to vector<8x8xi32>
    %45 = vector.broadcast %43 : vector<1x8xi32> to vector<8x8xi32>
    %46 = arith.cmpi eq, %44, %45 : vector<8x8xi32>
    %cst_22 = arith.constant 5.000000e-01 : f32
    %47 = vector.broadcast %cst_22 : f32 to vector<1x8xf32>
    %48 = arith.cmpf ogt, %19, %47 : vector<1x8xf32>
    %49 = vector.broadcast %48 : vector<1x8xi1> to vector<8x8xi1>
    %50 = arith.andi %46, %49 : vector<8x8xi1>
    %cst_23 = arith.constant 0.000000e+00 : f32
    %51 = vector.broadcast %cst_23 : f32 to vector<8x8xf32>
    %52 = arith.select %50, %18, %51 : vector<8x8xi1>, vector<8x8xf32>
    %c0_24 = arith.constant 0 : index
    %c0_25 = arith.constant 0 : index
    %53 = vector.load %arg11[%c0_24, %c0_25] : memref<8x1xf32, #tpu.memory_space<vmem>>, vector<8x1xf32>
    %54 = arith.mulf %52, %7 : vector<8x8xf32>
    %cst_26 = arith.constant dense<0.000000e+00> : vector<8xf32>
    %55 = vector.multi_reduction <add>, %54, %cst_26 [1] : vector<8x8xf32> to vector<8xf32>
    %56 = vector.shape_cast %55 : vector<8xf32> to vector<8x1xf32>
    %57 = arith.addf %53, %56 : vector<8x1xf32>
    %c0_27 = arith.constant 0 : index
    %c0_28 = arith.constant 0 : index
    %58 = vector.load %arg11[%c0_27, %c0_28] : memref<8x1xf32, #tpu.memory_space<vmem>>, vector<8x1xf32>
    tpu.vector_store %arg11[%c0_27, %c0_28], %57 {strides = array<i32>} : memref<8x1xf32, #tpu.memory_space<vmem>>, vector<8x1xf32>,
    %c0_29 = arith.constant 0 : index
    %c0_30 = arith.constant 0 : index
    %59 = vector.load %arg12[%c0_29, %c0_30] : memref<8x1xf32, #tpu.memory_space<vmem>>, vector<8x1xf32>
    %cst_31 = arith.constant dense<0.000000e+00> : vector<8xf32>
    %60 = vector.multi_reduction <add>, %52, %cst_31 [1] : vector<8x8xf32> to vector<8xf32>
    %61 = vector.shape_cast %60 : vector<8xf32> to vector<8x1xf32>
    %62 = arith.addf %59, %61 : vector<8x1xf32>
    %c0_32 = arith.constant 0 : index
    %c0_33 = arith.constant 0 : index
    %63 = vector.load %arg12[%c0_32, %c0_33] : memref<8x1xf32, #tpu.memory_space<vmem>>, vector<8x1xf32>
    tpu.vector_store %arg12[%c0_32, %c0_33], %62 {strides = array<i32>} : memref<8x1xf32, #tpu.memory_space<vmem>>, vector<8x1xf32>,
    %c0_34 = arith.constant 0 : index
    %c0_35 = arith.constant 0 : index
    %64 = vector.load %arg9[%c0_34, %c0_35] : memref<8x1xf32, #tpu.memory_space<vmem>>, vector<8x1xf32>
    tpu.vector_store %arg9[%c0_34, %c0_35], %29 {strides = array<i32>} : memref<8x1xf32, #tpu.memory_space<vmem>>, vector<8x1xf32>,
    %c0_i32_36 = arith.constant 0 : i32
    %65 = arith.cmpi eq, %arg1, %c0_i32_36 : i32
    %66 = arith.extui %65 : i1 to i32
    %c0_i32_37 = arith.constant 0 : i32
    %67 = arith.cmpi ne, %66, %c0_i32_37 : i32
    scf.if %67 {
      %c0_38 = arith.constant 0 : index
      %c0_39 = arith.constant 0 : index
      %68 = vector.load %arg10[%c0_38, %c0_39] : memref<8x1xf32, #tpu.memory_space<vmem>>, vector<8x1xf32>
      %cst_40 = arith.constant 7.99999975E-20 : f32
      %69 = vector.broadcast %cst_40 : f32 to vector<8x1xf32>
      %70 = arith.addf %68, %69 : vector<8x1xf32>
      %71 = math.log %70 : vector<8x1xf32>
      %c0_41 = arith.constant 0 : index
      %c0_42 = arith.constant 0 : index
      %72 = vector.load %arg11[%c0_41, %c0_42] : memref<8x1xf32, #tpu.memory_space<vmem>>, vector<8x1xf32>
      %c0_43 = arith.constant 0 : index
      %c0_44 = arith.constant 0 : index
      %73 = vector.load %arg12[%c0_43, %c0_44] : memref<8x1xf32, #tpu.memory_space<vmem>>, vector<8x1xf32>
      %c0_45 = arith.constant 0 : index
      %c0_46 = arith.constant 0 : index
      %74 = vector.load %arg9[%c0_45, %c0_46] : memref<8x1xf32, #tpu.memory_space<vmem>>, vector<8x1xf32>
      %75 = arith.addf %74, %71 : vector<8x1xf32>
      %76 = arith.mulf %73, %75 : vector<8x1xf32>
      %77 = arith.subf %72, %76 : vector<8x1xf32>
      %c0_47 = arith.constant 0 : index
      %c0_48 = arith.constant 0 : index
      %78 = vector.load %arg12[%c0_47, %c0_48] : memref<8x1xf32, #tpu.memory_space<vmem>>, vector<8x1xf32>
      %cst_49 = arith.constant 1.000000e+00 : f32
      %79 = vector.broadcast %cst_49 : f32 to vector<8x1xf32>
      %80 = arith.addf %79, %78 : vector<8x1xf32>
      %81 = arith.divf %77, %80 : vector<8x1xf32>
      %cst_50 = arith.constant 0.000000e+00 : f32
      %82 = vector.broadcast %cst_50 : f32 to vector<8x1xf32>
      %83 = arith.subf %82, %81 : vector<8x1xf32>
      %c0_51 = arith.constant 0 : index
      %c0_52 = arith.constant 0 : index
      %84 = vector.load %arg7[%c0_51, %c0_52] : memref<8x1xf32, #tpu.memory_space<vmem>>, vector<8x1xf32>
      %85 = arith.mulf %83, %84 : vector<8x1xf32>
      %c0_53 = arith.constant 0 : index
      %c0_54 = arith.constant 0 : index
      %86 = vector.load %arg8[%c0_53, %c0_54] : memref<8x1xf32, #tpu.memory_space<vmem>>, vector<8x1xf32>
      tpu.vector_store %arg8[%c0_53, %c0_54], %85 {strides = array<i32>} : memref<8x1xf32, #tpu.memory_space<vmem>>, vector<8x1xf32>,
    } else {
    }
    return
  }
  func.func @transform_0(%arg0: i32, %arg1: i32) -> (i32, i32) {
    %c0_i32 = arith.constant 0 : i32
    %c0_i32_0 = arith.constant 0 : i32
    return %arg0, %c0_i32 : i32, i32
  }
  func.func @transform_1(%arg0: i32, %arg1: i32) -> (i32, i32) {
    %c0_i32 = arith.constant 0 : i32
    %c0_i32_0 = arith.constant 0 : i32
    return %arg1, %c0_i32 : i32, i32
  }
  func.func @transform_2(%arg0: i32, %arg1: i32) -> (i32, i32) {
    %c0_i32 = arith.constant 0 : i32
    %c0_i32_0 = arith.constant 0 : i32
    return %arg0, %c0_i32 : i32, i32
  }
  func.func @transform_3(%arg0: i32, %arg1: i32) -> (i32, i32) {
    %c0_i32 = arith.constant 0 : i32
    %c0_i32_0 = arith.constant 0 : i32
    return %c0_i32, %arg1 : i32, i32
  }
  func.func @transform_4(%arg0: i32, %arg1: i32) -> (i32, i32) {
    %c0_i32 = arith.constant 0 : i32
    %c0_i32_0 = arith.constant 0 : i32
    return %c0_i32, %arg1 : i32, i32
  }
  func.func @transform_5(%arg0: i32, %arg1: i32) -> (i32, i32) {
    %c0_i32 = arith.constant 0 : i32
    %c0_i32_0 = arith.constant 0 : i32
    return %arg0, %c0_i32 : i32, i32
  }
  func.func @transform_6(%arg0: i32, %arg1: i32) -> (i32, i32) {
    %c0_i32 = arith.constant 0 : i32
    %c0_i32_0 = arith.constant 0 : i32
    return %arg0, %c0_i32 : i32, i32
  }
}

</mosaic_0001>

<llo_original>
// kernel: contrastive_loss.1
$region0: #{contrastive_loss.1}
  #allocation0 [shape = 'u32[]', space=smem, size = 0x4, offset = 0x4, fixed_abs, tag = 'smem constant byte address 0x4 - core index']
  #allocation1 [shape = 'u32[144,128]{1,0:T(1,128)}', space=vmem, size = 0x12000, scoped, tag = 'internal scratch']
  #allocation2 [shape = 'f32[8,1]{1,0:T(8,128)}', space=vmem, size = 0x1000, scoped, tag = 'scratch operand']
  #allocation3 [shape = 'f32[8,1]{1,0:T(8,128)}', space=vmem, size = 0x1000, scoped, tag = 'scratch operand']
  #allocation4 [shape = 'f32[8,1]{1,0:T(8,128)}', space=vmem, size = 0x1000, scoped, tag = 'scratch operand']
  #allocation5 [shape = 'f32[8,1]{1,0:T(8,128)}', space=vmem, size = 0x1000, scoped, tag = 'scratch operand']
  %s0 = inlined_call_operand.vmem [shape: f32[8,128], index: 0, kind: input, shape index: {}, may-alias: {0,1}]
  %s1 = inlined_call_operand.vmem [shape: f32[8,128], index: 1, kind: input, shape index: {}, may-alias: {0,1}]
  %s2 = inlined_call_operand.vmem [shape: s32[8,1], index: 2, kind: input, shape index: {}]
  %s3 = inlined_call_operand.vmem [shape: s32[1,8], index: 3, kind: input, shape index: {}]
  %s4 = inlined_call_operand.vmem [shape: f32[1,8], index: 4, kind: input, shape index: {}]
  %s5 = inlined_call_operand.vmem [shape: f32[8,1], index: 5, kind: input, shape index: {}]
  %s6 = inlined_call_operand.vmem [shape: f32[8,1], index: 6, kind: output, shape index: {}]
  %s7 = sld [smem:[#allocation0]]
  $region42: #{contrastive_loss.1} parent=0
    _
  %s9 = ssub.s32 1, %s7
  %s10 = scalar_select 0, %s9, %s7
  // Predicated region
  $region2: #{contrastive_loss.1} parent=0 // pred_check
    _
  $region3: #{contrastive_loss.1} parent=0 // pred_check_branch
    %12 = sbr.rel (0) target = $region5
  $region4: #{contrastive_loss.1} parent=0 // pred_region
    _
  $region5: #{contrastive_loss.1} parent=0 // pred_fallthru
    _
  // Predicated region
  $region6: #{contrastive_loss.1} parent=0 // pred_check
    _
  $region7: #{contrastive_loss.1} parent=0 // pred_check_branch
    %14 = sbr.rel (0) target = $region9
  $region8: #{contrastive_loss.1} parent=0 // pred_region
    _
  $region9: #{contrastive_loss.1} parent=0 // pred_fallthru
    _
  // Predicated region
  $region10: #{contrastive_loss.1} parent=0 // pred_check
    _
  $region11: #{contrastive_loss.1} parent=0 // pred_check_branch
    %16 = sbr.rel (0) target = $region13
  $region12: #{contrastive_loss.1} parent=0 // pred_region
    _
  $region13: #{contrastive_loss.1} parent=0 // pred_fallthru
    _
  // Predicated region
  $region14: #{contrastive_loss.1} parent=0 // pred_check
    _
  $region15: #{contrastive_loss.1} parent=0 // pred_check_branch
    %18 = sbr.rel (0) target = $region17
  $region16: #{contrastive_loss.1} parent=0 // pred_region
    _
  $region17: #{contrastive_loss.1} parent=0 // pred_fallthru
    _
  // Predicated region
  $region18: #{contrastive_loss.1} parent=0 // pred_check
    _
  $region19: #{contrastive_loss.1} parent=0 // pred_check_branch
    %20 = sbr.rel (0) target = $region21
  $region20: #{contrastive_loss.1} parent=0 // pred_region
    _
  $region21: #{contrastive_loss.1} parent=0 // pred_fallthru
    _
  // Predicated region
  $region22: #{contrastive_loss.1} parent=0 // pred_check
    _
  $region23: #{contrastive_loss.1} parent=0 // pred_check_branch
    %22 = sbr.rel (0) target = $region25
  $region24: #{contrastive_loss.1} parent=0 // pred_region
    _
  $region25: #{contrastive_loss.1} parent=0 // pred_fallthru
    _
  %p23 = scmp.eq.s32.totalorder 0, 0
  // Predicated region
  $region26: #{contrastive_loss.1} parent=0 // pred_check
    %p24 = pneg %p23
  $region27: #{contrastive_loss.1} parent=0 // pred_check_branch
    %26 = sbr.rel (%p24) target = $region29
  $region28: #{contrastive_loss.1} parent=0 // pred_region
    %vm27 = vcmask 7168
    %28 = vst.msk [vmem:[#allocation2] sm:$0xff] %vm27, -inf
    %29 = vst.msk [vmem:[#allocation3] sm:$0xff] %vm27, 0.0
    %30 = vst.msk [vmem:[#allocation4] sm:$0xff] %vm27, 0.0
    %31 = vst.msk [vmem:[#allocation5] sm:$0xff] %vm27, 0.0
  $region29: #{contrastive_loss.1} parent=0 // pred_fallthru
    _
  %v32 = vld [vmem:[%s0] sm:$0xff]
  %v33 = vld [vmem:[%s1] sm:$0xff]
  %v34 = vmul.f32 %v32, 14.285714
  %35 = vmatprep.subr.mxu0 0.0
  %36 = vmatpush1.xpose.msra.mxu0 %v33
  %37 = vmatprep.subr.mxu0 0.0
  %38 = vmatpush1.xpose.msra.mxu0 0.0
  %39 = vmatprep.subr.mxu0 0.0
  %40 = vmatpush1.xpose.msra.mxu0 0.0
  %41 = vmatprep.subr.mxu0 0.0
  %42 = vmatpush1.xpose.msra.mxu0 0.0
  %43 = vmatprep.subr.mxu0 0.0
  %44 = vmatpush1.xpose.msra.mxu0 0.0
  %45 = vmatprep.subr.mxu0 0.0
  %46 = vmatpush1.xpose.msra.mxu0 0.0
  %47 = vmatprep.subr.mxu0 0.0
  %48 = vmatpush1.xpose.msra.mxu0 0.0
  %49 = vmatprep.subr.mxu0 0.0
  %50 = vmatpush1.xpose.msra.mxu0 0.0
  %51 = vmatprep.subr.mxu0 0.0
  %52 = vmatpush1.xpose.msra.mxu0 0.0
  %53 = vmatprep.subr.mxu0 0.0
  %54 = vmatpush1.xpose.msra.mxu0 0.0
  %55 = vmatprep.subr.mxu0 0.0
  %56 = vmatpush1.xpose.msra.mxu0 0.0
  %57 = vmatprep.subr.mxu0 0.0
  %58 = vmatpush1.xpose.msra.mxu0 0.0
  %59 = vmatprep.subr.mxu0 0.0
  %60 = vmatpush1.xpose.msra.mxu0 0.0
  %61 = vmatprep.subr.mxu0 0.0
  %62 = vmatpush1.xpose.msra.mxu0 0.0
  %63 = vmatprep.subr.mxu0 0.0
  %64 = vmatpush1.xpose.msra.mxu0 0.0
  %65 = vmatprep.subr.mxu0 0.0
  %66 = vmatpush1.xpose.msra.mxu0 0.0
  %67 = vmatprep.subr.mxu0 0.0
  %68 = vmatpush1.xpose.msra.mxu0 0.0
  %69 = vmatprep.subr.mxu0 0.0
  %70 = vmatpush1.xpose.msra.mxu0 0.0
  %71 = vmatprep.subr.mxu0 0.0
  %72 = vmatpush1.xpose.msra.mxu0 0.0
  %73 = vmatprep.subr.mxu0 0.0
  %74 = vmatpush1.xpose.msra.mxu0 0.0
  %75 = vmatprep.subr.mxu0 0.0
  %76 = vmatpush1.xpose.msra.mxu0 0.0
  %77 = vmatprep.subr.mxu0 0.0
  %78 = vmatpush1.xpose.msra.mxu0 0.0
  %79 = vmatprep.subr.mxu0 0.0
  %80 = vmatpush1.xpose.msra.mxu0 0.0
  %81 = vmatprep.subr.mxu0 0.0
  %82 = vmatpush1.xpose.msra.mxu0 0.0
  %83 = vmatprep.subr.mxu0 0.0
  %84 = vmatpush1.xpose.msra.mxu0 0.0
  %85 = vmatprep.subr.mxu0 0.0
  %86 = vmatpush1.xpose.msra.mxu0 0.0
  %87 = vmatprep.subr.mxu0 0.0
  %88 = vmatpush1.xpose.msra.mxu0 0.0
  %89 = vmatprep.subr.mxu0 0.0
  %90 = vmatpush1.xpose.msra.mxu0 0.0
  %91 = vmatprep.subr.mxu0 0.0
  %92 = vmatpush1.xpose.msra.mxu0 0.0
  %93 = vmatprep.subr.mxu0 0.0
  %94 = vmatpush1.xpose.msra.mxu0 0.0
  %95 = vmatprep.subr.mxu0 0.0
  %96 = vmatpush1.xpose.msra.mxu0 0.0
  %97 = vmatprep.subr.mxu0 0.0
  %98 = vmatpush1.xpose.msra.mxu0 0.0
  %99 = vmatprep.mubr.f32.mxu0 0.0
  %100 = vmatmul.mubr.f32.gmra.mrb[0].mxu0 %v34
  %v101 = vpop.f32.mrb[0].mxu0
  %v102 = vadd.f32 0.0, %v101
  %v103 = vpop.f32.mrb[0].mxu0
  %104 = vdwg.mxu0
  %s105 = smul.u32 0, 8
  %v106 = vlaneseq
  %v107 = vshrl.u32 %v106, 7
  %v108 = vstv %s105
  %v109 = vadd.s32 %v108, %v107
  %s110 = smul.u32 0, 8
  %v111 = vlaneseq
  %v112 = vand.u32 %v111, 127
  %v113 = vstv %s110
  %v114 = vadd.s32 %v113, %v112
  %vm115 = vcmp.ne.s32.totalorder %v109, %v114
  %v116 = vsel %vm115, 1, 0
  %v117 = vcvt.s32.f32 %v116
  %v118 = vld [vmem:[%s4] sm:$0x1]
  %v119 = vsub.f32 %v118, 1.0
  %v120 = vmul.f32 %v119, 1e+30
  %v122 = vlaneseq
  %v123 = vshrl.u32 %v122, 7
  %v124 = vsub.s32 0, %v123
  %v125 = vrot.slane %v120, %v124
  %v127 = vadd.f32 %v102, %v125
  %v128 = vld [vmem:[#allocation2] sm:$0xff]
  %vm129 = vcmask 64512
  %v130 = vsel %vm129, %v127, -inf
  %131 = vmax.xlane.f32.xlu0 %v130
  %v132 = vpop.xlane.xlu0 %131
  %v133 = vmax.f32 %v128, %v132
  %v134 = vsub.f32 %v128, %v133
  %v135 = vmul.f32 %v134, 1.442695
  %v136 = vpow.pop %v135
  %138 = vset.pattern.permute.xlu0 0
  %139 = vperm.xlu0 %138, %v133
  %v140 = vpop.permute.xlu0 %139
  %v142 = vsub.f32 %v127, %v140
  %v143 = vmul.f32 %v142, 1.442695
  %v144 = vpow.pop %v143
  %v145 = vmul.f32 %v144, %v117
  %v146 = vld [vmem:[#allocation3] sm:$0xff]
  %v147 = vmul.f32 %v136, %v146
  %v148 = vsel %vm129, %v145, 0.0
  %149 = vadd.xlane.f32.xlu0 %v148
  %v150 = vpop.xlane.xlu0 %149
  %v151 = vadd.f32 %v147, %v150
  %vm152 = vcmask 7168
  %153 = vst.msk [vmem:[#allocation3] sm:$0xff] %vm152, %v151
  %v154 = vld [vmem:[%s2] sm:$0xff]
  %v155 = vld [vmem:[%s3] sm:$0x1]
  %156 = vset.pattern.permute.xlu0 0
  %157 = vperm.xlu0 %156, %v154
  %v158 = vpop.permute.xlu0 %157
  %v159 = vlaneseq
  %v160 = vshrl.u32 %v159, 7
  %v161 = vsub.s32 0, %v160
  %v162 = vrot.slane %v155, %v161
  %vm163 = vcmp.eq.s32.totalorder %v158, %v162
  %vm164 = vcmp.gt.f32.partialorder %v118, 0.5
  %v165 = vsel %vm164, 1, 0
  %v166 = vlaneseq
  %v167 = vshrl.u32 %v166, 7
  %v168 = vsub.s32 0, %v167
  %v169 = vrot.slane %v165, %v168
  %vm170 = vcmp.eq.s32.totalorder %v169, 1
  %vm171 = vmand %vm163, %vm170
  %v172 = vsel %vm171, %v117, 0.0
  %v173 = vld [vmem:[#allocation4] sm:$0xff]
  %v174 = vmul.f32 %v172, %v102
  %v175 = vsel %vm129, %v174, 0.0
  %176 = vadd.xlane.f32.xlu0 %v175
  %v177 = vpop.xlane.xlu0 %176
  %v178 = vadd.f32 %v173, %v177
  %179 = vst.msk [vmem:[#allocation4] sm:$0xff] %vm152, %v178
  %v180 = vld [vmem:[#allocation5] sm:$0xff]
  %v181 = vsel %vm129, %v172, 0.0
  %182 = vadd.xlane.f32.xlu0 %v181
  %v183 = vpop.xlane.xlu0 %182
  %v184 = vadd.f32 %v180, %v183
  %185 = vst.msk [vmem:[#allocation5] sm:$0xff] %vm152, %v184
  %186 = vst.msk [vmem:[#allocation2] sm:$0xff] %vm152, %v133
  // Predicated region
  $region30: #{contrastive_loss.1} parent=0 // pred_check
    %p187 = pneg %p23
  $region31: #{contrastive_loss.1} parent=0 // pred_check_branch
    %189 = sbr.rel (%p187) target = $region33
  $region32: #{contrastive_loss.1} parent=0 // pred_region
    %v190 = vld [vmem:[#allocation3] sm:$0xff]
    %v191 = vadd.f32 %v190, 8e-20
    %v192 = vlog2.pop %v191
    %v193 = vmul.f32 %v192, 0.6931472
    %v194 = vld [vmem:[#allocation4] sm:$0xff]
    %v195 = vld [vmem:[#allocation5] sm:$0xff]
    %v196 = vld [vmem:[#allocation2] sm:$0xff]
    %v197 = vadd.f32 %v196, %v193
    %v198 = vmul.f32 %v195, %v197
    %v199 = vsub.f32 %v194, %v198
    %v200 = vadd.f32 %v195, 1.0
    %v201 = vrcp.pop %v200
    %v202 = vmul.f32 %v199, %v201
    %v203 = vsub.f32 0.0, %v202
    %v204 = vld [vmem:[%s5] sm:$0xff]
    %v205 = vmul.f32 %v203, %v204
    %206 = vst.msk [vmem:[%s6] sm:$0xff] %vm152, %v205
  $region33: #{contrastive_loss.1} parent=0 // pred_fallthru
    _
  // Predicated region
  $region34: #{contrastive_loss.1} parent=0 // pred_check
    _
  $region35: #{contrastive_loss.1} parent=0 // pred_check_branch
    %208 = sbr.rel (0) target = $region37
  $region36: #{contrastive_loss.1} parent=0 // pred_region
    _
  $region37: #{contrastive_loss.1} parent=0 // pred_fallthru
    _
  // Predicated region
  $region38: #{contrastive_loss.1} parent=0 // pred_check
    _
  $region39: #{contrastive_loss.1} parent=0 // pred_check_branch
    %210 = sbr.rel (0) target = $region41
  $region40: #{contrastive_loss.1} parent=0 // pred_region
    _
  $region41: #{contrastive_loss.1} parent=0 // pred_fallthru
    _

</llo_original>
